<compile_context>
chip_gen: v7x
topology: tpu7x:2x2x1
jax: 0.10.0
libtpu: 0.0.40
codegen_flags: <defaults>
</compile_context>

<pallas_src>
import functools

import jax
import jax.numpy as jnp
from jax import lax
from jax.experimental import pallas as pl
from jax.experimental.pallas import tpu as pltpu


_LANES = 128
# (4096, 128) f32 block = 2 MiB.  4 pipelined arrays x 2 buffers = 16 MiB VMEM.
_MAX_BLOCK_ROWS = 4096
_VMEM_LIMIT_BYTES = 32 * 1024 * 1024  # explicit: covers v5e's 16 MiB default


def _act(x):
    # Stand-in for the caller-provided `act` module.
    return jnp.tanh(x)


def _round_up(x, m):
    return ((x + m - 1) // m) * m


# ----------------------------------------------------------------------------
# Kernels: pure elementwise VPU/EUP work on one (block_rows, 128) tile.
# ----------------------------------------------------------------------------
def _split_kernel(re_ref, im_ref, ore_ref, oim_ref):
    # act(z.real) + 1j * act(z.imag)
    ore_ref[...] = _act(re_ref[...])
    oim_ref[...] = _act(im_ref[...])


def _phase_kernel(re_ref, im_ref, ore_ref, oim_ref):
    # act(|z|) * exp(1j*angle(z)) = act(|z|) * (re/|z|, im/|z|); angle(0)=0 -> (1,0)
    re = re_ref[...]
    im = im_ref[...]

    # Overflow-safe |z|: when max(|re|,|im|) is large enough that re^2 + im^2
    # could exceed the f32 range, pre-scale by an exact power of two (the
    # direction re/|z|, im/|z| is scale invariant; the magnitude is rescaled
    # back and only saturates to +inf when the true |z| itself overflows f32,
    # where tanh(inf) == 1 matches the hypot-based reference).
    amax = jnp.maximum(jnp.abs(re), jnp.abs(im))
    big = amax > jnp.float32(1.0e18)
    scale = jnp.where(big, jnp.float32(2.0 ** -65), jnp.float32(1.0))
    inv_scale = jnp.where(big, jnp.float32(2.0 ** 65), jnp.float32(1.0))
    re_s = re * scale
    im_s = im * scale

    mag2 = re_s * re_s + im_s * im_s
    nz = mag2 > 0.0
    # Single EUP rsqrt replaces sqrt + divide; guarded so z == 0 stays finite.
    inv_mag = jnp.where(nz, lax.rsqrt(jnp.where(nz, mag2, 1.0)), 0.0)
    mag = (mag2 * inv_mag) * inv_scale          # == |z|, exactly 0 when z == 0
    a = _act(mag)                                # NOTE: EUP tanh; see header re v7x
    cos_t = jnp.where(nz, re_s * inv_mag, 1.0)   # exp(1j*0) = 1 at z == 0
    sin_t = im_s * inv_mag                       # inv_mag == 0 at z == 0 -> sin = 0
    ore_ref[...] = a * cos_t
    oim_ref[...] = a * sin_t


# ----------------------------------------------------------------------------
# Block-row selection: (8, 128)-aligned blocks, >= 2 programs when possible so
# the "parallel" grid axis shards across v7x's two TensorCores.
# ----------------------------------------------------------------------------
def _choose_block_rows(rows):
    if rows <= 8:
        return rows  # single full-array block (legal: equals full array dims)
    block_rows = min(_round_up(pl.cdiv(rows, 2), 8), _MAX_BLOCK_ROWS)
    # Prefer an even program count for balanced 2-TC work split (best effort).
    nprog = pl.cdiv(rows, block_rows)
    if nprog > 2 and nprog % 2 == 1:
        alt = _round_up(pl.cdiv(rows, nprog + 1), 8)
        if alt >= 8:
            block_rows = alt
    return block_rows


# ----------------------------------------------------------------------------
# Planar fast path (preferred in-model form): float32 re/im in, float32 re/im
# out.  No complex extraction / recombination passes around the pallas_call.
# ----------------------------------------------------------------------------
@functools.partial(jax.jit, static_argnames=("use_phase",))
def complex_act_planar(re, im, use_phase=False):
    orig_shape = re.shape
    re = re.astype(jnp.float32).reshape(-1)
    im = im.astype(jnp.float32).reshape(-1)

    n = re.size
    n_pad = pl.cdiv(n, _LANES) * _LANES
    if n_pad != n:
        # TODO(synk): ragged tail (n % 128 != 0) still pads -> one extra copy
        # pass per plane; aligned sizes (the common case) skip this entirely.
        re = jnp.pad(re, (0, n_pad - n))
        im = jnp.pad(im, (0, n_pad - n))

    rows = n_pad // _LANES
    re2d = re.reshape(rows, _LANES)
    im2d = im.reshape(rows, _LANES)

    block_rows = _choose_block_rows(rows)
    grid = (pl.cdiv(rows, block_rows),)
    spec = pl.BlockSpec((block_rows, _LANES), lambda i: (i, 0))
    kernel = _phase_kernel if use_phase else _split_kernel

    ore2d, oim2d = pl.pallas_call(
        kernel,
        out_shape=(
            jax.ShapeDtypeStruct((rows, _LANES), jnp.float32),
            jax.ShapeDtypeStruct((rows, _LANES), jnp.float32),
        ),
        grid=grid,
        in_specs=[spec, spec],
        out_specs=(spec, spec),
        compiler_params=pltpu.CompilerParams(
            dimension_semantics=("parallel",),
            vmem_limit_bytes=_VMEM_LIMIT_BYTES,
        ),
    )(re2d, im2d)

    ore = ore2d.reshape(-1)
    oim = oim2d.reshape(-1)
    if n_pad != n:
        ore = ore[:n]
        oim = oim[:n]
    return ore.reshape(orig_shape), oim.reshape(orig_shape)


# ----------------------------------------------------------------------------
# Complex-in / complex-out convenience matching the PyTorch module signature.
# NOTE: jnp.real/jnp.imag and lax.complex are separate XLA passes that cannot
# fuse with the Pallas custom call; inside a model, keep activations planar and
# call complex_act_planar directly (perf opt #1 from the review).
# ----------------------------------------------------------------------------
@functools.partial(jax.jit, static_argnames=("use_phase",))
def complex_act(z, use_phase=False):
    ore, oim = complex_act_planar(jnp.real(z), jnp.imag(z), use_phase=use_phase)
    return lax.complex(ore, oim)


# ----------------------------------------------------------------------------
# Pure-JAX reference (mirrors the PyTorch forward exactly)
# ----------------------------------------------------------------------------
def complex_act_ref(z, use_phase=False):
    if use_phase:
        return (_act(jnp.abs(z)) * jnp.exp(1j * jnp.angle(z))).astype(jnp.complex64)
    return (_act(jnp.real(z)) + 1j * _act(jnp.imag(z))).astype(jnp.complex64)


if __name__ == "__main__":
    keys = jax.random.split(jax.random.PRNGKey(0), 4)
    ok = True
    msgs = []
    # (2,4,16,16): NCHW-shaped complex input (numel % 128 == 0, no padding).
    # (3,5,7,9): ragged numel exercises the pad / tail-slice path.
    for si, shape in enumerate(((2, 4, 16, 16), (3, 5, 7, 9))):
        re = jax.random.normal(keys[2 * si], shape, dtype=jnp.float32)
        im = jax.random.normal(keys[2 * si + 1], shape, dtype=jnp.float32)
        z = lax.complex(re, im)
        for use_phase in (False, True):
            ref = complex_act_ref(z, use_phase=use_phase)

            # 1) complex API (drop-in for the PyTorch module forward)
            out = jax.block_until_ready(complex_act(z, use_phase=use_phase))
            err = float(jnp.max(jnp.abs(out - ref)))
            good = (out.shape == z.shape and out.dtype == jnp.complex64
                    and err < 1e-5)

            # 2) planar fast path (what a model should call)
            pre, pim = complex_act_planar(re, im, use_phase=use_phase)
            jax.block_until_ready((pre, pim))
            perr = float(jnp.max(jnp.abs(lax.complex(pre, pim) - ref)))
            good = good and pre.shape == shape and pim.shape == shape and perr < 1e-5

            if not good:
                ok = False
                msgs.append(
                    f"shape={shape} use_phase={use_phase} err={err:.3e} perr={perr:.3e}")

    if ok:
        print("KERNEL_OK")
    else:
        print("FAILED: " + "; ".join(msgs))
</pallas_src>

<mosaic_0001>
module attributes {stable_mosaic.version = 11 : i64} {
  func.func @_split_kernel(%arg0: i32, %arg1: memref<8x128xf32, #tpu.memory_space<vmem>>, %arg2: memref<8x128xf32, #tpu.memory_space<vmem>>, %arg3: memref<8x128xf32, #tpu.memory_space<vmem>>, %arg4: memref<8x128xf32, #tpu.memory_space<vmem>>) attributes {dimension_semantics = [#tpu.dimension_semantics<parallel>], iteration_bounds = array<i64: 2>, scalar_prefetch = 0 : i64, scratch_operands = 0 : i64, tpu.core_type = #tpu.core_type<tc>, window_params = [{transform_indices = @transform_0, window_bounds = array<i64: 8, 128>}, {transform_indices = @transform_1, window_bounds = array<i64: 8, 128>}, {transform_indices = @transform_2, window_bounds = array<i64: 8, 128>}, {transform_indices = @transform_3, window_bounds = array<i64: 8, 128>}]} {
    %c0 = arith.constant 0 : index
    %c0_0 = arith.constant 0 : index
    %0 = vector.load %arg1[%c0, %c0_0] : memref<8x128xf32, #tpu.memory_space<vmem>>, vector<8x128xf32>
    %1 = math.tanh %0 : vector<8x128xf32>
    %c0_1 = arith.constant 0 : index
    %c0_2 = arith.constant 0 : index
    %2 = vector.load %arg3[%c0_1, %c0_2] : memref<8x128xf32, #tpu.memory_space<vmem>>, vector<8x128xf32>
    tpu.vector_store %arg3[%c0_1, %c0_2], %1 {strides = array<i32>} : memref<8x128xf32, #tpu.memory_space<vmem>>, vector<8x128xf32>,
    %c0_3 = arith.constant 0 : index
    %c0_4 = arith.constant 0 : index
    %3 = vector.load %arg2[%c0_3, %c0_4] : memref<8x128xf32, #tpu.memory_space<vmem>>, vector<8x128xf32>
    %4 = math.tanh %3 : vector<8x128xf32>
    %c0_5 = arith.constant 0 : index
    %c0_6 = arith.constant 0 : index
    %5 = vector.load %arg4[%c0_5, %c0_6] : memref<8x128xf32, #tpu.memory_space<vmem>>, vector<8x128xf32>
    tpu.vector_store %arg4[%c0_5, %c0_6], %4 {strides = array<i32>} : memref<8x128xf32, #tpu.memory_space<vmem>>, vector<8x128xf32>,
    return
  }
  func.func @transform_0(%arg0: i32) -> (i32, i32) {
    %c0_i32 = arith.constant 0 : i32
    %c0_i32_0 = arith.constant 0 : i32
    return %arg0, %c0_i32 : i32, i32
  }
  func.func @transform_1(%arg0: i32) -> (i32, i32) {
    %c0_i32 = arith.constant 0 : i32
    %c0_i32_0 = arith.constant 0 : i32
    return %arg0, %c0_i32 : i32, i32
  }
  func.func @transform_2(%arg0: i32) -> (i32, i32) {
    %c0_i32 = arith.constant 0 : i32
    %c0_i32_0 = arith.constant 0 : i32
    return %arg0, %c0_i32 : i32, i32
  }
  func.func @transform_3(%arg0: i32) -> (i32, i32) {
    %c0_i32 = arith.constant 0 : i32
    %c0_i32_0 = arith.constant 0 : i32
    return %arg0, %c0_i32 : i32, i32
  }
}

</mosaic_0001>

<llo_original>
// kernel: complex_act_planar.1
$region0: #{complex_act_planar.1}
  #allocation0 [shape = 'u32[]', space=smem, size = 0x4, offset = 0x4, fixed_abs, tag = 'smem constant byte address 0x4 - core index']
  #allocation1 [shape = 'u32[144,128]{1,0:T(1,128)}', space=vmem, size = 0x12000, scoped, tag = 'internal scratch']
  %s0 = inlined_call_operand.vmem [shape: f32[16,128], index: 0, kind: input, shape index: {}]
  %s1 = inlined_call_operand.vmem [shape: f32[16,128], index: 1, kind: input, shape index: {}]
  %s2 = inlined_call_operand.vmem [shape: f32[16,128], index: 2, kind: output, shape index: {0}]
  %s3 = inlined_call_operand.vmem [shape: f32[16,128], index: 3, kind: output, shape index: {1}]
  %4 = xla_tuple %s2, %s3
  %s5 = sld [smem:[#allocation0]]
  $region49: #{complex_act_planar.1} parent=0
    _
  %s7 = ssub.s32 1, %s5
  %s8 = scalar_select 0, %s7, %s5
  loop: start=0, step=1, limit=4
  $region2: #{complex_act_planar.1} parent=0 // loop_pre_header
    _
  $region3: #{complex_act_planar.1} parent=0 // loop_header
    %s10 = sphi 0, %s14
    %p11 = scmp.ge.s32.totalorder %s10, 4
    %s20 = sphi 0, %s22
    %s23 = sphi 0, %s20
    %s24 = sphi 0, %s23
    %s40 = sphi 0, %s24
    %s46 = sphi 0, %s48
    %s49 = sphi 0, %s46
    %s50 = sphi 0, %s49
    %s66 = sphi 0, %s50
    %s72 = sphi 0, %s74
    %s75 = sphi 0, %s72
    %s76 = sphi 0, %s75
    %s92 = sphi 0, %s76
    %s98 = sphi 0, %s100
    %s101 = sphi 0, %s98
    %s102 = sphi 0, %s101
    %s118 = sphi 0, %s102
  $region4: #{complex_act_planar.1} parent=0 // loop_header_branch
    %13 = sbr.rel (%p11) target = $region8
  $region5: #{complex_act_planar.1} parent=0 // loop_body
    %s15 = ssub.s32 %s10, 1
    %s16 = ssub.s32 %s10, 2
    %s17 = sadd.s32 %s10, 1
    %s18 = ssub.s32 %s10, %s17
    %p19 = scmp.eq.s32.totalorder %s18, 0
    %s21 = sadd.s32 %s20, 1
    %s22 = scalar_select %p19, %s20, %s21
    %p25 = pneg %p19
    %p26 = scmp.eq.s32.totalorder %s10, 1
    %p27 = por %p25, %p26
    %p28 = scmp.ne.s32.totalorder %s20, %s23
    %p29 = scmp.eq.s32.totalorder %s10, 0
    %p30 = por %p28, %p29
    %p31 = scmp.ne.s32.totalorder %s20, %s23
    %p32 = scmp.eq.s32.totalorder %s15, 1
    %p33 = por %p31, %p32
    %p34 = scmp.ne.s32.totalorder %s23, %s24
    %p35 = scmp.eq.s32.totalorder %s15, 0
    %p36 = por %p34, %p35
    %p37 = scmp.ne.s32.totalorder %s23, %s24
    %p38 = scmp.eq.s32.totalorder %s16, 1
    %p39 = por %p37, %p38
    %p41 = scmp.ne.s32.totalorder %s24, %s40
    %p42 = scmp.eq.s32.totalorder %s16, 0
    %p43 = por %p41, %p42
    %s44 = ssub.s32 %s10, %s17
    %p45 = scmp.eq.s32.totalorder %s44, 0
    %s47 = sadd.s32 %s46, 1
    %s48 = scalar_select %p45, %s46, %s47
    %p51 = pneg %p45
    %p52 = scmp.eq.s32.totalorder %s10, 1
    %p53 = por %p51, %p52
    %p54 = scmp.ne.s32.totalorder %s46, %s49
    %p55 = scmp.eq.s32.totalorder %s10, 0
    %p56 = por %p54, %p55
    %p57 = scmp.ne.s32.totalorder %s46, %s49
    %p58 = scmp.eq.s32.totalorder %s15, 1
    %p59 = por %p57, %p58
    %p60 = scmp.ne.s32.totalorder %s49, %s50
    %p61 = scmp.eq.s32.totalorder %s15, 0
    %p62 = por %p60, %p61
    %p63 = scmp.ne.s32.totalorder %s49, %s50
    %p64 = scmp.eq.s32.totalorder %s16, 1
    %p65 = por %p63, %p64
    %p67 = scmp.ne.s32.totalorder %s50, %s66
    %p68 = scmp.eq.s32.totalorder %s16, 0
    %p69 = por %p67, %p68
    %s70 = ssub.s32 %s10, %s17
    %p71 = scmp.eq.s32.totalorder %s70, 0
    %s73 = sadd.s32 %s72, 1
    %s74 = scalar_select %p71, %s72, %s73
    %p77 = pneg %p71
    %p78 = scmp.eq.s32.totalorder %s10, 1
    %p79 = por %p77, %p78
    %p80 = scmp.ne.s32.totalorder %s72, %s75
    %p81 = scmp.eq.s32.totalorder %s10, 0
    %p82 = por %p80, %p81
    %p83 = scmp.ne.s32.totalorder %s72, %s75
    %p84 = scmp.eq.s32.totalorder %s15, 1
    %p85 = por %p83, %p84
    %p86 = scmp.ne.s32.totalorder %s75, %s76
    %p87 = scmp.eq.s32.totalorder %s15, 0
    %p88 = por %p86, %p87
    %p89 = scmp.ne.s32.totalorder %s75, %s76
    %p90 = scmp.eq.s32.totalorder %s16, 1
    %p91 = por %p89, %p90
    %p93 = scmp.ne.s32.totalorder %s76, %s92
    %p94 = scmp.eq.s32.totalorder %s16, 0
    %p95 = por %p93, %p94
    %s96 = ssub.s32 %s10, %s17
    %p97 = scmp.eq.s32.totalorder %s96, 0
    %s99 = sadd.s32 %s98, 1
    %s100 = scalar_select %p97, %s98, %s99
    %p103 = pneg %p97
    %p104 = scmp.eq.s32.totalorder %s10, 1
    %p105 = por %p103, %p104
    %p106 = scmp.ne.s32.totalorder %s98, %s101
    %p107 = scmp.eq.s32.totalorder %s10, 0
    %p108 = por %p106, %p107
    %p109 = scmp.ne.s32.totalorder %s98, %s101
    %p110 = scmp.eq.s32.totalorder %s15, 1
    %p111 = por %p109, %p110
    %p112 = scmp.ne.s32.totalorder %s101, %s102
    %p113 = scmp.eq.s32.totalorder %s15, 0
    %p114 = por %p112, %p113
    %p115 = scmp.ne.s32.totalorder %s101, %s102
    %p116 = scmp.eq.s32.totalorder %s16, 1
    %p117 = por %p115, %p116
    %p119 = scmp.ne.s32.totalorder %s102, %s118
    %p120 = scmp.eq.s32.totalorder %s16, 0
    %p121 = por %p119, %p120
    %p122 = scmp.le.s32.totalorder 1, %s10
    %p123 = scmp.lt.s32.totalorder %s10, 3
    %p124 = pnand %p122, %p123
    %p125 = pneg %p124
    // Predicated region
    $region9: #{complex_act_planar.1} parent=5 // pred_check
      _
    $region10: #{complex_act_planar.1} parent=5 // pred_check_branch
      %127 = sbr.rel (%p124) target = $region12
    $region11: #{complex_act_planar.1} parent=5 // pred_region
      %s128 = ssub.s32 %s10, 1
    $region12: #{complex_act_planar.1} parent=5 // pred_fallthru
      _
    %p129 = scmp.lt.s32.totalorder %s10, 2
    // Predicated region
    $region13: #{complex_act_planar.1} parent=5 // pred_check
      %p130 = pneg %p129
    $region14: #{complex_act_planar.1} parent=5 // pred_check_branch
      %132 = sbr.rel (%p130) target = $region16
    $region15: #{complex_act_planar.1} parent=5 // pred_region
      // Predicated region
      $region17: #{complex_act_planar.1} parent=15 // pred_check
        %p133 = pneg %p30
      $region18: #{complex_act_planar.1} parent=15 // pred_check_branch
        %135 = sbr.rel (%p133) target = $region20
      $region19: #{complex_act_planar.1} parent=15 // pred_region
        %p136 = scmp.lt.s32.totalorder %s10, 1
        %s137 = scalar_select %p136, %s10, 1
        %s138 = smul.addr %s137, 8
        %s139 = scalar_lea.vmem %s0, %s138
      $region20: #{complex_act_planar.1} parent=15 // pred_fallthru
        _
      // Predicated region
      $region21: #{complex_act_planar.1} parent=15 // pred_check
        %p140 = pneg %p56
      $region22: #{complex_act_planar.1} parent=15 // pred_check_branch
        %142 = sbr.rel (%p140) target = $region24
      $region23: #{complex_act_planar.1} parent=15 // pred_region
        %p143 = scmp.lt.s32.totalorder %s10, 1
        %s144 = scalar_select %p143, %s10, 1
        %s145 = smul.addr %s144, 8
        %s146 = scalar_lea.vmem %s1, %s145
      $region24: #{complex_act_planar.1} parent=15 // pred_fallthru
        _
    $region16: #{complex_act_planar.1} parent=5 // pred_fallthru
      _
    %p147 = scmp.le.s32.totalorder 1, %s10
    %p148 = scmp.lt.s32.totalorder %s10, 3
    %p149 = pnand %p147, %p148
    %p150 = pneg %p149
    // Predicated region
    $region25: #{complex_act_planar.1} parent=5 // pred_check
      _
    $region26: #{complex_act_planar.1} parent=5 // pred_check_branch
      %152 = sbr.rel (%p149) target = $region28
    $region27: #{complex_act_planar.1} parent=5 // pred_region
      %s153 = ssub.s32 %s10, 1
      %p154 = scmp.lt.s32.totalorder %s15, 1
      %s155 = scalar_select %p154, %s15, 1
      %s156 = smul.addr %s155, 8
      %s157 = scalar_lea.vmem %s0, %s156
      %p158 = pneg %p36
      %p159 = pneg %p33
      %p160 = scmp.lt.s32.totalorder %s15, 1
      %s161 = scalar_select %p160, %s15, 1
      %s162 = smul.addr %s161, 8
      %s163 = scalar_lea.vmem %s1, %s162
      %p164 = pneg %p62
      %p165 = pneg %p59
      %p166 = pneg %p88
      %p167 = pneg %p85
      %p168 = scmp.lt.s32.totalorder %s15, 1
      %s169 = scalar_select %p168, %s15, 1
      %s170 = smul.addr %s169, 8
      %s171 = scalar_lea.vmem %s2, %s170
      %p172 = pneg %p114
      %p173 = pneg %p111
      %p174 = scmp.lt.s32.totalorder %s15, 1
      %s175 = scalar_select %p174, %s15, 1
      %s176 = smul.addr %s175, 8
      %s177 = scalar_lea.vmem %s3, %s176
      %p178 = scmp.lt.s32.totalorder %s15, 1
      %s179 = scalar_select %p178, %s15, 1
      %s180 = smul.addr %s179, 8
      %s181 = scalar_lea.vmem %s0, %s180
      %p182 = scmp.lt.s32.totalorder %s15, 1
      %s183 = scalar_select %p182, %s15, 1
      %s184 = smul.addr %s183, 8
      %s185 = scalar_lea.vmem %s1, %s184
      %p186 = scmp.lt.s32.totalorder %s15, 1
      %s187 = scalar_select %p186, %s15, 1
      %s188 = smul.addr %s187, 8
      %s189 = scalar_lea.vmem %s2, %s188
      %p190 = scmp.lt.s32.totalorder %s15, 1
      %s191 = scalar_select %p190, %s15, 1
      %s192 = smul.addr %s191, 8
      %s193 = scalar_lea.vmem %s3, %s192
      %v194 = vld [vmem:[%s181] sm:$0xff]
      %v195 = vtanh.pop %v194
      %196 = vst [vmem:[%s189] sm:$0xff] %v195
      %v197 = vld [vmem:[%s185] sm:$0xff]
      %v198 = vtanh.pop %v197
      %199 = vst [vmem:[%s193] sm:$0xff] %v198
      %p200 = scmp.lt.s32.totalorder %s15, 1
      %s201 = scalar_select %p200, %s15, 1
      %s202 = smul.addr %s201, 8
      %s203 = scalar_lea.vmem %s2, %s202
      %p204 = scmp.lt.s32.totalorder %s15, 1
      %s205 = scalar_select %p204, %s15, 1
      %s206 = smul.addr %s205, 8
      %s207 = scalar_lea.vmem %s3, %s206
      // Predicated region
      $region29: #{complex_act_planar.1} parent=27 // pred_check
        %p208 = pneg %p85
      $region30: #{complex_act_planar.1} parent=27 // pred_check_branch
        %210 = sbr.rel (%p208) target = $region32
      $region31: #{complex_act_planar.1} parent=27 // pred_region
        _
      $region32: #{complex_act_planar.1} parent=27 // pred_fallthru
        _
      // Predicated region
      $region33: #{complex_act_planar.1} parent=27 // pred_check
        %p211 = pneg %p111
      $region34: #{complex_act_planar.1} parent=27 // pred_check_branch
        %213 = sbr.rel (%p211) target = $region36
      $region35: #{complex_act_planar.1} parent=27 // pred_region
        _
      $region36: #{complex_act_planar.1} parent=27 // pred_fallthru
        _
    $region28: #{complex_act_planar.1} parent=5 // pred_fallthru
      _
    %p214 = scmp.le.s32.totalorder 2, %s10
    // Predicated region
    $region37: #{complex_act_planar.1} parent=5 // pred_check
      %p215 = pneg %p214
    $region38: #{complex_act_planar.1} parent=5 // pred_check_branch
      %217 = sbr.rel (%p215) target = $region40
    $region39: #{complex_act_planar.1} parent=5 // pred_region
      %s218 = ssub.s32 %s10, 2
      // Predicated region
      $region41: #{complex_act_planar.1} parent=39 // pred_check
        %p219 = pneg %p91
      $region42: #{complex_act_planar.1} parent=39 // pred_check_branch
        %221 = sbr.rel (%p219) target = $region44
      $region43: #{complex_act_planar.1} parent=39 // pred_region
        %p222 = scmp.lt.s32.totalorder %s16, 1
        %s223 = scalar_select %p222, %s16, 1
        %s224 = smul.addr %s223, 8
        %s225 = scalar_lea.vmem %s2, %s224
      $region44: #{complex_act_planar.1} parent=39 // pred_fallthru
        _
      // Predicated region
      $region45: #{complex_act_planar.1} parent=39 // pred_check
        %p226 = pneg %p117
      $region46: #{complex_act_planar.1} parent=39 // pred_check_branch
        %228 = sbr.rel (%p226) target = $region48
      $region47: #{complex_act_planar.1} parent=39 // pred_region
        %p229 = scmp.lt.s32.totalorder %s16, 1
        %s230 = scalar_select %p229, %s16, 1
        %s231 = smul.addr %s230, 8
        %s232 = scalar_lea.vmem %s3, %s231
      $region48: #{complex_act_planar.1} parent=39 // pred_fallthru
        _
    $region40: #{complex_act_planar.1} parent=5 // pred_fallthru
      _
  $region6: #{complex_act_planar.1} parent=0 // loop_footer
    %s14 = sadd.s32 1, %s10
  $region7: #{complex_act_planar.1} parent=0 // loop_footer_branch
    %9 = sbr.rel target = $region3
  $region8: #{complex_act_planar.1} parent=0 // loop_exit
    _

</llo_original>
